<compile_context>
chip_gen: v7x
topology: tpu7x:2x2x1
jax: 0.10.0
libtpu: 0.0.40
codegen_flags: <defaults>
</compile_context>

<pallas_src>
import functools

import jax
import jax.numpy as jnp
from jax import lax
from jax.experimental import pallas as pl
from jax.experimental.pallas import tpu as pltpu


def _distill_loss_kernel(y_ref, t_ref, tgt_ref, out_ref, *,
                         lambda_param, n_rows, needs_mask):
    """One batch tile: per-lane partial sums of the combined distillation loss."""
    y = y_ref[...].astype(jnp.float32)      # student logits   (tile_rows, C)
    t = t_ref[...].astype(jnp.float32)      # teacher logits   (tile_rows, C)
    tgt = tgt_ref[...].astype(jnp.float32)  # soft targets     (tile_rows, C)
    lam = jnp.float32(lambda_param)

    # Student: stable log-sum-exp pieces (no explicit log_softmax tensor).
    m_y = jnp.max(y, axis=-1, keepdims=True)
    sy = y - m_y
    lse_y = jnp.log(jnp.sum(jnp.exp(sy), axis=-1, keepdims=True))
    neg_ls = lse_y - sy                                  # == -log_softmax(y)

    # Teacher: softmax / log-softmax.  Division hoisted to a per-row exact
    # reciprocal (N reciprocals + N*C multiplies instead of N*C divides).
    # log_p is never -inf, so p * log_p is exactly 0 where p underflows,
    # matching torch's xlogy convention inside KLDivLoss.
    m_t = jnp.max(t, axis=-1, keepdims=True)
    st = t - m_t
    et = jnp.exp(st)
    z = jnp.sum(et, axis=-1, keepdims=True)
    inv_z = jnp.float32(1.0) / z          # exact (1e-5 test tolerance)
    log_z = jnp.log(z)
    p = et * inv_z
    log_p = st - log_z

    # Per-element contribution:
    #   -ls * target + lam * p * (log_p - ls)
    # = (target + lam * p) * (-ls) + lam * p * log_p
    e = (tgt + lam * p) * neg_ls + lam * (p * log_p)

    if needs_mask:
        # Only the partial trailing tile actually needs this; statically
        # compiled out when N % tile_rows == 0.  Row predicate is (tile, 1),
        # select-based so garbage OOB rows (exp of padding) cannot leak NaN.
        i = pl.program_id(0)
        row = i * y.shape[0] + lax.broadcasted_iota(jnp.int32, (y.shape[0], 1), 0)
        e = jnp.where(row < n_rows, e, jnp.float32(0.0))

    # Lane-dense per-tile partial sums; scalar reduction happens in the wrapper
    # so this grid axis stays fully parallel (megacore on v7x).
    out_ref[...] = jnp.sum(e, axis=0, keepdims=True).reshape(out_ref.shape)


def _round_up(x, m):
    return ((x + m - 1) // m) * m


def _vmem_capacity_bytes():
    """Per-TensorCore VMEM capacity; conservative (v7x = 64 MiB) fallback."""
    try:
        info = pltpu.get_tpu_info()
        cap = getattr(info, "vmem_capacity_bytes", None)
        if cap:
            return int(cap)
    except Exception:
        pass
    return 64 * 1024 * 1024


def _choose_tile_rows(n, bytes_per_row, budget_bytes, max_tile_rows, sub=16):
    """Pick a batch-tile size that fits the VMEM working set and keeps the
    grid >= 4 steps (>= 2 for v7x megacore) whenever tiles can stay >= 512 rows."""
    n_pad = _round_up(n, sub)
    tile = (budget_bytes // max(bytes_per_row, 1)) // sub * sub
    tile = max(sub, min(tile, max_tile_rows, n_pad))

    min_rows_per_tile = 512   # keep per-step (~0.35us) overhead < ~2%
    for want in (4, 2):
        if pl.cdiv(n_pad, tile) >= want:
            break
        cand = _round_up(pl.cdiv(n_pad, want), sub)
        if cand >= min_rows_per_tile:
            tile = cand
            break

    if tile >= n:
        tile = n              # single full-batch block: always legal, no mask
    return tile


def distillation_loss_from_logits(student_logits, teacher_logits, target,
                                  lambda_param, *, max_tile_rows=4096):
    """loss = -sum(log_softmax(y)*target)/N + lambda * KLDiv_batchmean(log_softmax(y), softmax(t))."""
    n, c = student_logits.shape
    assert teacher_logits.shape == (n, c) and target.shape == (n, c)
    # TODO(synk): for very large class counts (C >> 8k) add a class-axis grid
    # with an online logsumexp (and fold the (1, C) partial down to (1, 128))
    # instead of requiring the full row in one block.

    # Generation-aware VMEM limits (v7x: 64 MiB/TC, v5e/v6e: 128 MiB).
    vmem_cap = _vmem_capacity_bytes()
    vmem_limit_bytes = min(vmem_cap * 5 // 8, 48 * 1024 * 1024)  # 40 MiB on v7x, 48 MiB otherwise
    vmem_budget_bytes = vmem_limit_bytes // 2

    # Honest per-row footprint: double-buffered input tiles (3 inputs x 2 bufs)
    # plus ~8 live f32 (tile, C) intermediates in the compute path.
    in_itemsize = sum(int(a.dtype.itemsize)
                      for a in (student_logits, teacher_logits, target))
    bytes_per_row = c * (2 * in_itemsize + 8 * 4)

    tile_rows = _choose_tile_rows(n, bytes_per_row, vmem_budget_bytes, max_tile_rows)
    num_tiles = pl.cdiv(n, tile_rows)
    needs_mask = (n % tile_rows) != 0

    kernel = functools.partial(
        _distill_loss_kernel,
        lambda_param=float(lambda_param), n_rows=n, needs_mask=needs_mask)

    cost = pl.CostEstimate(
        flops=13 * n * c,
        transcendentals=2 * n * c + 2 * n,
        bytes_accessed=n * c * in_itemsize + num_tiles * c * 4,
    )

    partials = pl.pallas_call(
        kernel,
        out_shape=jax.ShapeDtypeStruct((num_tiles, 1, c), jnp.float32),
        grid_spec=pltpu.PrefetchScalarGridSpec(
            num_scalar_prefetch=0,
            grid=(num_tiles,),
            in_specs=[
                pl.BlockSpec((tile_rows, c), lambda i: (i, 0)),  # student logits
                pl.BlockSpec((tile_rows, c), lambda i: (i, 0)),  # teacher logits
                pl.BlockSpec((tile_rows, c), lambda i: (i, 0)),  # targets
            ],
            out_specs=pl.BlockSpec((1, 1, c), lambda i: (i, 0, 0)),
        ),
        compiler_params=pltpu.CompilerParams(
            dimension_semantics=("parallel",),
            vmem_limit_bytes=vmem_limit_bytes,
        ),
        cost_estimate=cost,
    )(student_logits, teacher_logits, target)

    return jnp.sum(partials) / jnp.float32(n)


def _reference_loss(y, t_logits, target, lam):
    ls = jax.nn.log_softmax(y.astype(jnp.float32), axis=1)
    p = jax.nn.softmax(t_logits.astype(jnp.float32), axis=1)
    n = y.shape[0]
    div = jnp.sum(p * (jnp.log(p) - ls)) / n                 # KLDiv batchmean
    normal = -jnp.sum(ls * target.astype(jnp.float32)) / n
    return normal + lam * div


if __name__ == "__main__":
    key = jax.random.PRNGKey(0)
    kx, kw, ky, kt = jax.random.split(key, 4)

    # Small shapes: batch=16, teacher input dim=32, classes=128 (lane aligned).
    N, D, C = 16, 32, 128
    LAM = 0.5

    x = jax.random.normal(kx, (N, D), dtype=jnp.float32)
    w_teacher = jax.random.normal(kw, (D, C), dtype=jnp.float32) / jnp.sqrt(D)
    y = jax.random.normal(ky, (N, C), dtype=jnp.float32)                  # student logits
    target = jax.nn.softmax(jax.random.normal(kt, (N, C), jnp.float32), axis=1)

    def teacher_model(inp):
        # TODO(synk): the real teacher is an arbitrary external nn.Module; a
        # stand-in linear head runs in plain JAX outside the Pallas loss kernel.
        return inp @ w_teacher

    def distillation_loss(x_, y_, target_):
        return distillation_loss_from_logits(y_, teacher_model(x_), target_, LAM)

    loss = jax.block_until_ready(distillation_loss(x, y, target))
    ref = _reference_loss(y, teacher_model(x), target, LAM)
    assert jnp.allclose(loss, ref, rtol=1e-5, atol=1e-5), (loss, ref)

    # Check 2: multi-tile grid with a partial (masked) trailing tile.
    N2 = 24
    k1, k2, k3 = jax.random.split(jax.random.PRNGKey(1), 3)
    y2 = jax.random.normal(k1, (N2, C), jnp.float32)
    t2 = jax.random.normal(k2, (N2, C), jnp.float32)
    tgt2 = jax.nn.softmax(jax.random.normal(k3, (N2, C), jnp.float32), axis=1)
    loss2 = jax.block_until_ready(
        distillation_loss_from_logits(y2, t2, tgt2, LAM, max_tile_rows=16))
    ref2 = _reference_loss(y2, t2, tgt2, LAM)
    assert jnp.allclose(loss2, ref2, rtol=1e-5, atol=1e-5), (loss2, ref2)

    # Check 3: bf16 storage at the pallas_call boundary (halves HBM reads;
    # kernel upcasts to f32 internally, so accuracy tracks the f32 reference
    # computed from the same bf16-rounded inputs).
    N3 = 64
    k4, k5, k6 = jax.random.split(jax.random.PRNGKey(2), 3)
    y3 = jax.random.normal(k4, (N3, C), jnp.float32).astype(jnp.bfloat16)
    t3 = jax.random.normal(k5, (N3, C), jnp.float32).astype(jnp.bfloat16)
    tgt3 = jax.nn.softmax(jax.random.normal(k6, (N3, C), jnp.float32), axis=1
                          ).astype(jnp.bfloat16)
    loss3 = jax.block_until_ready(
        distillation_loss_from_logits(y3, t3, tgt3, LAM))
    ref3 = _reference_loss(y3, t3, tgt3, LAM)
    assert jnp.allclose(loss3, ref3, rtol=1e-4, atol=1e-4), (loss3, ref3)

    print("KERNEL_OK")
</pallas_src>

<mosaic_0001>
module attributes {stable_mosaic.version = 11 : i64} {
  func.func @_distill_loss_kernel(%arg0: i32, %arg1: memref<16x128xf32, #tpu.memory_space<vmem>>, %arg2: memref<16x128xf32, #tpu.memory_space<vmem>>, %arg3: memref<16x128xf32, #tpu.memory_space<vmem>>, %arg4: memref<1x1x128xf32, #tpu.memory_space<vmem>>) attributes {dimension_semantics = [#tpu.dimension_semantics<parallel>], iteration_bounds = array<i64: 1>, scalar_prefetch = 0 : i64, scratch_operands = 0 : i64, tpu.core_type = #tpu.core_type<tc>, window_params = [{transform_indices = @transform_0, window_bounds = array<i64: 16, 128>}, {transform_indices = @transform_1, window_bounds = array<i64: 16, 128>}, {transform_indices = @transform_2, window_bounds = array<i64: 16, 128>}, {transform_indices = @transform_3, window_bounds = array<i64: 1, 1, 128>}]} {
    %c0 = arith.constant 0 : index
    %c0_0 = arith.constant 0 : index
    %0 = vector.load %arg1[%c0, %c0_0] : memref<16x128xf32, #tpu.memory_space<vmem>>, vector<16x128xf32>
    %c0_1 = arith.constant 0 : index
    %c0_2 = arith.constant 0 : index
    %1 = vector.load %arg2[%c0_1, %c0_2] : memref<16x128xf32, #tpu.memory_space<vmem>>, vector<16x128xf32>
    %c0_3 = arith.constant 0 : index
    %c0_4 = arith.constant 0 : index
    %2 = vector.load %arg3[%c0_3, %c0_4] : memref<16x128xf32, #tpu.memory_space<vmem>>, vector<16x128xf32>
    %cst = arith.constant dense<0xFF800000> : vector<16xf32>
    %3 = vector.multi_reduction <maximumf>, %0, %cst [1] : vector<16x128xf32> to vector<16xf32>
    %4 = vector.shape_cast %3 : vector<16xf32> to vector<16x1xf32>
    %5 = vector.broadcast %4 : vector<16x1xf32> to vector<16x128xf32>
    %6 = arith.subf %0, %5 : vector<16x128xf32>
    %7 = math.exp %6 : vector<16x128xf32>
    %cst_5 = arith.constant dense<0.000000e+00> : vector<16xf32>
    %8 = vector.multi_reduction <add>, %7, %cst_5 [1] : vector<16x128xf32> to vector<16xf32>
    %9 = vector.shape_cast %8 : vector<16xf32> to vector<16x1xf32>
    %10 = math.log %9 : vector<16x1xf32>
    %11 = vector.broadcast %10 : vector<16x1xf32> to vector<16x128xf32>
    %12 = arith.subf %11, %6 : vector<16x128xf32>
    %cst_6 = arith.constant dense<0xFF800000> : vector<16xf32>
    %13 = vector.multi_reduction <maximumf>, %1, %cst_6 [1] : vector<16x128xf32> to vector<16xf32>
    %14 = vector.shape_cast %13 : vector<16xf32> to vector<16x1xf32>
    %15 = vector.broadcast %14 : vector<16x1xf32> to vector<16x128xf32>
    %16 = arith.subf %1, %15 : vector<16x128xf32>
    %17 = math.exp %16 : vector<16x128xf32>
    %cst_7 = arith.constant dense<0.000000e+00> : vector<16xf32>
    %18 = vector.multi_reduction <add>, %17, %cst_7 [1] : vector<16x128xf32> to vector<16xf32>
    %19 = vector.shape_cast %18 : vector<16xf32> to vector<16x1xf32>
    %cst_8 = arith.constant 1.000000e+00 : f32
    %20 = vector.broadcast %cst_8 : f32 to vector<16x1xf32>
    %21 = arith.divf %20, %19 : vector<16x1xf32>
    %22 = math.log %19 : vector<16x1xf32>
    %23 = vector.broadcast %21 : vector<16x1xf32> to vector<16x128xf32>
    %24 = arith.mulf %17, %23 : vector<16x128xf32>
    %25 = vector.broadcast %22 : vector<16x1xf32> to vector<16x128xf32>
    %26 = arith.subf %16, %25 : vector<16x128xf32>
    %cst_9 = arith.constant 5.000000e-01 : f32
    %27 = vector.broadcast %cst_9 : f32 to vector<16x128xf32>
    %28 = arith.mulf %27, %24 : vector<16x128xf32>
    %29 = arith.addf %2, %28 : vector<16x128xf32>
    %30 = arith.mulf %29, %12 : vector<16x128xf32>
    %31 = arith.mulf %24, %26 : vector<16x128xf32>
    %cst_10 = arith.constant 5.000000e-01 : f32
    %32 = vector.broadcast %cst_10 : f32 to vector<16x128xf32>
    %33 = arith.mulf %32, %31 : vector<16x128xf32>
    %34 = arith.addf %30, %33 : vector<16x128xf32>
    %cst_11 = arith.constant dense<0.000000e+00> : vector<128xf32>
    %35 = vector.multi_reduction <add>, %34, %cst_11 [0] : vector<16x128xf32> to vector<128xf32>
    %36 = vector.shape_cast %35 : vector<128xf32> to vector<1x128xf32>
    %37 = vector.shape_cast %36 : vector<1x128xf32> to vector<1x1x128xf32>
    %c0_12 = arith.constant 0 : index
    %c0_13 = arith.constant 0 : index
    %c0_14 = arith.constant 0 : index
    %38 = vector.load %arg4[%c0_12, %c0_13, %c0_14] : memref<1x1x128xf32, #tpu.memory_space<vmem>>, vector<1x1x128xf32>
    tpu.vector_store %arg4[%c0_12, %c0_13, %c0_14], %37 {strides = array<i32>} : memref<1x1x128xf32, #tpu.memory_space<vmem>>, vector<1x1x128xf32>,
    return
  }
  func.func @transform_0(%arg0: i32) -> (i32, i32) {
    %c0_i32 = arith.constant 0 : i32
    %c0_i32_0 = arith.constant 0 : i32
    return %arg0, %c0_i32 : i32, i32
  }
  func.func @transform_1(%arg0: i32) -> (i32, i32) {
    %c0_i32 = arith.constant 0 : i32
    %c0_i32_0 = arith.constant 0 : i32
    return %arg0, %c0_i32 : i32, i32
  }
  func.func @transform_2(%arg0: i32) -> (i32, i32) {
    %c0_i32 = arith.constant 0 : i32
    %c0_i32_0 = arith.constant 0 : i32
    return %arg0, %c0_i32 : i32, i32
  }
  func.func @transform_3(%arg0: i32) -> (i32, i32, i32) {
    %c0_i32 = arith.constant 0 : i32
    %c0_i32_0 = arith.constant 0 : i32
    %c0_i32_1 = arith.constant 0 : i32
    return %arg0, %c0_i32, %c0_i32_0 : i32, i32, i32
  }
}

</mosaic_0001>

<llo_original>
// kernel: tpu_custom_call.1
$region0: #{tpu_custom_call.1}
  #allocation0 [shape = 'u32[]', space=smem, size = 0x4, offset = 0x4, fixed_abs, tag = 'smem constant byte address 0x4 - core index']
  #allocation1 [shape = 'u32[144,128]{1,0:T(1,128)}', space=vmem, size = 0x12000, scoped, tag = 'internal scratch']
  %s0 = inlined_call_operand.hbm [shape: f32[16,128], index: 0, kind: input, shape index: {}]
  %s1 = inlined_call_operand.hbm [shape: f32[16,128], index: 1, kind: input, shape index: {}]
  %s2 = inlined_call_operand.hbm [shape: f32[16,128], index: 2, kind: input, shape index: {}]
  %s3 = inlined_call_operand.hbm [shape: f32[1,1,128], index: 3, kind: output, shape index: {}]
  %s4 = sld [smem:[#allocation0]]
  $region34: #{tpu_custom_call.1} parent=0
    _
  %s6 = ssub.s32 1, %s4
  %s7 = scalar_select 0, %s6, %s4
  $region1: #{tpu_custom_call.1} parent=0
    #allocation2 [shape = 'u8[8192]{0}', space=vmem, size = 0x2000, scoped, tag = 'input window, operand 0, single buffered']
    #allocation3 [shape = 's32[1]{0}', space=sflag, size = 0x4, scoped, tag = 'scoped memory for tpu_custom_call.1']
    #allocation4 [shape = 's32[1]{0}', space=sflag, size = 0x4, scoped, tag = 'scoped memory for tpu_custom_call.1']
    #allocation5 [shape = 'u8[8192]{0}', space=vmem, size = 0x2000, scoped, tag = 'input window, operand 1, single buffered']
    #allocation6 [shape = 's32[1]{0}', space=sflag, size = 0x4, scoped, tag = 'scoped memory for tpu_custom_call.1']
    #allocation7 [shape = 'u8[8192]{0}', space=vmem, size = 0x2000, scoped, tag = 'input window, operand 2, single buffered']
    #allocation8 [shape = 'u8[512]{0}', space=vmem, size = 0x400, scoped, tag = 'output window, operand 0, single buffered']
    %8 = vsyncpa [#allocation3], 0
    %9 = vsyncpa [#allocation6], 0
    %10 = vsyncpa [#allocation4], 0
    // Predicated region
    $region2: #{tpu_custom_call.1} parent=1 // pred_check
      _
    $region3: #{tpu_custom_call.1} parent=1 // pred_check_branch
      %12 = sbr.rel (0) target = $region5
    $region4: #{tpu_custom_call.1} parent=1 // pred_region
      %s14 = ssub.s32 256, 256
      %15 = vsyncadd [#allocation3], %s14
      %s16 = sshll.u32 [#allocation2], 4
      %s17 = int_to_ptr.vmem [resolvable:$true] %s16
      %22 = dma.hbm_to_vmem [thread:$0]  %s0, 256, %s17, [#allocation3], 128, 128, 8
    $region5: #{tpu_custom_call.1} parent=1 // pred_fallthru
      _
    // Predicated region
    $region6: #{tpu_custom_call.1} parent=1 // pred_check
      _
    $region7: #{tpu_custom_call.1} parent=1 // pred_check_branch
      %24 = sbr.rel (0) target = $region9
    $region8: #{tpu_custom_call.1} parent=1 // pred_region
      %s26 = ssub.s32 256, 256
      %27 = vsyncadd [#allocation6], %s26
      %s28 = sshll.u32 [#allocation5], 4
      %s29 = int_to_ptr.vmem [resolvable:$true] %s28
      %34 = dma.hbm_to_vmem [thread:$0]  %s1, 256, %s29, [#allocation6], 128, 128, 8
    $region9: #{tpu_custom_call.1} parent=1 // pred_fallthru
      _
    // Predicated region
    $region10: #{tpu_custom_call.1} parent=1 // pred_check
      _
    $region11: #{tpu_custom_call.1} parent=1 // pred_check_branch
      %36 = sbr.rel (0) target = $region13
    $region12: #{tpu_custom_call.1} parent=1 // pred_region
      %s38 = ssub.s32 256, 256
      %39 = vsyncadd [#allocation6], %s38
      %s40 = sshll.u32 [#allocation7], 4
      %s41 = int_to_ptr.vmem [resolvable:$true] %s40
      %46 = dma.hbm_to_vmem [thread:$0]  %s2, 256, %s41, [#allocation6], 128, 128, 8
    $region13: #{tpu_custom_call.1} parent=1 // pred_fallthru
      _
    // Predicated region
    $region14: #{tpu_custom_call.1} parent=1 // pred_check
      _
    $region15: #{tpu_custom_call.1} parent=1 // pred_check_branch
      %48 = sbr.rel (0) target = $region17
    $region16: #{tpu_custom_call.1} parent=1 // pred_region
      %49 = dma.done [#allocation3], 256
    $region17: #{tpu_custom_call.1} parent=1 // pred_fallthru
      _
    // Predicated region
    $region18: #{tpu_custom_call.1} parent=1 // pred_check
      _
    $region19: #{tpu_custom_call.1} parent=1 // pred_check_branch
      %51 = sbr.rel (0) target = $region21
    $region20: #{tpu_custom_call.1} parent=1 // pred_region
      %52 = dma.done [#allocation6], 256
    $region21: #{tpu_custom_call.1} parent=1 // pred_fallthru
      _
    // Predicated region
    $region22: #{tpu_custom_call.1} parent=1 // pred_check
      _
    $region23: #{tpu_custom_call.1} parent=1 // pred_check_branch
      %54 = sbr.rel (0) target = $region25
    $region24: #{tpu_custom_call.1} parent=1 // pred_region
      %55 = dma.done [#allocation6], 256
    $region25: #{tpu_custom_call.1} parent=1 // pred_fallthru
      _
    %v56 = vld [vmem:[#allocation2] sm:$0xff]
    %v57 = vld [vmem:[#allocation2 + $0x8] sm:$0xff]
    %v58 = vld [vmem:[#allocation5] sm:$0xff]
    %v59 = vld [vmem:[#allocation5 + $0x8] sm:$0xff]
    %v60 = vld [vmem:[#allocation7] sm:$0xff]
    %v61 = vld [vmem:[#allocation7 + $0x8] sm:$0xff]
    %62 = vmax.xlane.f32.xlu0 %v56
    %v63 = vpop.xlane.xlu0 %62
    %64 = vmax.xlane.f32.xlu0 %v57
    %v65 = vpop.xlane.xlu0 %64
    %v66 = vsub.f32 %v56, %v63
    %v67 = vsub.f32 %v57, %v65
    %v68 = vmul.f32 %v66, 1.442695
    %v69 = vpow.pop %v68
    %v70 = vmul.f32 %v67, 1.442695
    %v71 = vpow.pop %v70
    %72 = vadd.xlane.f32.xlu0 %v69
    %v73 = vpop.xlane.xlu0 %72
    %74 = vadd.xlane.f32.xlu0 %v71
    %v75 = vpop.xlane.xlu0 %74
    %v76 = vlog2.pop %v73
    %v77 = vmul.f32 %v76, 0.6931472
    %v78 = vlog2.pop %v75
    %v79 = vmul.f32 %v78, 0.6931472
    %v80 = vsub.f32 %v77, %v66
    %v81 = vsub.f32 %v79, %v67
    %82 = vmax.xlane.f32.xlu0 %v58
    %v83 = vpop.xlane.xlu0 %82
    %84 = vmax.xlane.f32.xlu0 %v59
    %v85 = vpop.xlane.xlu0 %84
    %v86 = vsub.f32 %v58, %v83
    %v87 = vsub.f32 %v59, %v85
    %v88 = vmul.f32 %v86, 1.442695
    %v89 = vpow.pop %v88
    %v90 = vmul.f32 %v87, 1.442695
    %v91 = vpow.pop %v90
    %92 = vadd.xlane.f32.xlu0 %v89
    %v93 = vpop.xlane.xlu0 %92
    %94 = vadd.xlane.f32.xlu0 %v91
    %v95 = vpop.xlane.xlu0 %94
    %v96 = vrcp.pop %v93
    %v97 = vmul.f32 1.0, %v96
    %v98 = vrcp.pop %v95
    %v99 = vmul.f32 1.0, %v98
    %v100 = vlog2.pop %v93
    %v101 = vmul.f32 %v100, 0.6931472
    %v102 = vlog2.pop %v95
    %v103 = vmul.f32 %v102, 0.6931472
    %v104 = vmul.f32 %v89, %v97
    %v105 = vmul.f32 %v91, %v99
    %v106 = vsub.f32 %v86, %v101
    %v107 = vsub.f32 %v87, %v103
    %v108 = vmul.f32 %v104, 0.5
    %v109 = vmul.f32 %v105, 0.5
    %v110 = vadd.f32 %v60, %v108
    %v111 = vadd.f32 %v61, %v109
    %v112 = vmul.f32 %v110, %v80
    %v113 = vmul.f32 %v111, %v81
    %v114 = vmul.f32 %v104, %v106
    %v115 = vmul.f32 %v105, %v107
    %v116 = vmul.f32 %v114, 0.5
    %v117 = vmul.f32 %v115, 0.5
    %v118 = vadd.f32 %v112, %v116
    %v119 = vadd.f32 %v113, %v117
    %v120 = vadd.f32 %v118, %v119
    %v121 = vrot.slane %v120, 4
    %v122 = vadd.f32 %v120, %v121
    %v123 = vrot.slane %v122, 2
    %v124 = vadd.f32 %v122, %v123
    %v125 = vrot.slane %v124, 1
    %v126 = vadd.f32 %v124, %v125
    %127 = vst [vmem:[#allocation8] sm:$0x1] %v126
    // Predicated region
    $region26: #{tpu_custom_call.1} parent=1 // pred_check
      _
    $region27: #{tpu_custom_call.1} parent=1 // pred_check_branch
      %129 = sbr.rel (0) target = $region29
    $region28: #{tpu_custom_call.1} parent=1 // pred_region
      %s131 = ssub.s32 16, 16
      %132 = vsyncadd [#allocation4], %s131
      %s134 = sshll.u32 [#allocation8], 4
      %s135 = int_to_ptr.vmem [resolvable:$true] %s134
      %137 = dma.vmem_to_hbm [thread:$0]  %s135, 16, %s3, [#allocation4]
    $region29: #{tpu_custom_call.1} parent=1 // pred_fallthru
      _
    // Predicated region
    $region30: #{tpu_custom_call.1} parent=1 // pred_check
      _
    $region31: #{tpu_custom_call.1} parent=1 // pred_check_branch
      %139 = sbr.rel (0) target = $region33
    $region32: #{tpu_custom_call.1} parent=1 // pred_region
      %140 = dma.done [#allocation4], 16
    $region33: #{tpu_custom_call.1} parent=1 // pred_fallthru
      _
    %141 = vsyncpa [#allocation3], 1
    %142 = vsyncpa [#allocation6], 1
    %143 = vsyncpa [#allocation4], 1

</llo_original>
